<compile_context>
chip_gen: v7x
topology: tpu7x:2x2x1
jax: 0.10.0
libtpu: 0.0.40
codegen_flags: <defaults>
</compile_context>

<pallas_src>
import functools

import numpy as np
import jax
import jax.numpy as jnp
from jax import lax
from jax.experimental import pallas as pl
from jax.experimental.pallas import tpu as pltpu

WIN = (9, 9, 9)   # module default win
EPS = 1e-6


# ----------------------------- constant builders ------------------------------

def _band_matrix(n, w):
    """B[i, j] = weight of input element i in the w-tap box sum centered at output j,
    with replicate ('edge') padding -- exactly Conv*d(padding='same',
    padding_mode='replicate') with all-ones weights along one axis."""
    left = (w - 1) // 2
    B = np.zeros((n, n), dtype=np.float32)
    for j in range(n):
        for o in range(-left, w - left):
            i = min(max(j + o, 0), n - 1)
            B[i, j] += 1.0
    return B


def _pick_batch_block(n, vol_bytes):
    """Largest divisor of n keeping >=2 grid steps (megacore) and bounded step VMEM."""
    budget = 8 << 20                       # double-buffered input bytes per grid step
    best = 1
    for nb in range(1, n + 1):
        if n % nb:
            continue
        if n >= 2 and n // nb < 2:
            continue                       # keep both v7x TensorCores busy
        if 4 * nb * vol_bytes > budget:    # 2 inputs x double buffering
            continue
        best = nb
    return best


# --------------------------------- kernel -------------------------------------

def _lncc_kernel(nb, d, hw, inv_win_size,
                 yt_ref, yp_ref, bhw_ref, bdd2_ref, bdd3_ref,
                 psum_ref, stack_ref):
    # yt_ref / yp_ref : (nb, C, D, HW) input blocks (native dtype, cast here)
    # bhw_ref         : (HW, HW)   = kron(B_H, B_W)        fused H+W box pass
    # bdd2_ref        : (2R, 2R)   = kron(I_2nb, B_D^T)    D pass for the 2-slice stack
    # bdd3_ref        : (3R, 3R)   = kron(I_3nb, B_D^T)    D pass for the 3-slice stack
    # psum_ref        : (1, HW)    per-grid-step partial sum of cc
    # stack_ref       : (3R, HW)   VMEM scratch for the stacked matmul LHS
    r = nb * d
    yt = yt_ref[...].astype(jnp.float32)                     # (nb, C, D, HW)
    yp = yp_ref[...].astype(jnp.float32)
    bhw = bhw_ref[...]

    # channel sums (the all-ones conv also reduces over input channels)
    st = jnp.sum(yt, axis=1).reshape(r, hw)                   # (nb*D, HW)
    sp = jnp.sum(yp, axis=1).reshape(r, hw)

    # ---- box pass 1: {sum_c yt, sum_c yp} stacked into scratch (no concatenate) ----
    stack_ref[0:r, :] = st
    stack_ref[r:2 * r, :] = sp
    x2 = stack_ref[0:2 * r, :]
    y2 = jnp.dot(x2, bhw, preferred_element_type=jnp.float32)            # H & W (MXU)
    m2 = jnp.dot(bdd2_ref[...], y2, preferred_element_type=jnp.float32)  # D, block-diag

    t_mean = (m2[0:r] * inv_win_size).reshape(nb, 1, d, hw)
    p_mean = (m2[r:2 * r] * inv_win_size).reshape(nb, 1, d, hw)

    tc = yt - t_mean                                          # broadcast over channels
    pc = yp - p_mean

    cross = jnp.sum(tc * pc, axis=1).reshape(r, hw)           # (nb*D, HW)
    t_var = jnp.sum(tc * tc, axis=1).reshape(r, hw)
    p_var = jnp.sum(pc * pc, axis=1).reshape(r, hw)

    # ---- box pass 2: {cross, t_var, p_var} in one stacked MXU pass ----
    stack_ref[0:r, :] = cross
    stack_ref[r:2 * r, :] = t_var
    stack_ref[2 * r:3 * r, :] = p_var
    y3 = jnp.dot(stack_ref[...], bhw, preferred_element_type=jnp.float32)
    m3 = jnp.dot(bdd3_ref[...], y3, preferred_element_type=jnp.float32)

    cross_b = m3[0:r]
    t_var_b = m3[r:2 * r]
    p_var_b = m3[2 * r:3 * r]

    cc = jnp.clip((cross_b * cross_b + EPS) / (t_var_b * p_var_b + EPS), 0.0, 1.0)
    # per-grid-step partial sum: drops the full-volume cc writeback + re-read
    psum_ref[...] = jnp.sum(cc, axis=0, keepdims=True)        # (1, HW) lane-dense


# --------------------------------- wrapper -------------------------------------

def lncc_loss(y_true, y_pred, win=WIN, batch_block=None):
    """Equivalent of LNCCLoss(win, n_channels=C, is_tensor=False)(y_true, y_pred)."""
    N, C, D, H, W = y_true.shape
    HW = H * W
    win_size = float(np.prod(win) * C)

    itemsize = np.dtype(y_true.dtype).itemsize
    vol_bytes = C * D * HW * itemsize                 # one batch element of one input
    nb = batch_block if batch_block is not None else _pick_batch_block(N, vol_bytes)
    assert N % nb == 0
    G = N // nb
    R = nb * D

    # Banded all-ones matrices implementing the replicate-padded separable box sums.
    b_h = _band_matrix(H, win[1])
    b_w = _band_matrix(W, win[2])
    b_d = _band_matrix(D, win[0])
    b_hw = jnp.asarray(np.kron(b_h, b_w))                                  # (HW, HW)
    bdt = np.ascontiguousarray(b_d.T)                                      # (D, D)
    b_dd2 = jnp.asarray(np.kron(np.eye(2 * nb, dtype=np.float32), bdt))    # (2R, 2R)
    b_dd3 = jnp.asarray(np.kron(np.eye(3 * nb, dtype=np.float32), bdt))    # (3R, 3R)

    # Lane-dense layout; keep native dtype (f32 cast happens per-tile in the kernel).
    yt = y_true.reshape(N, C, D, HW)
    yp = y_pred.reshape(N, C, D, HW)

    kernel = functools.partial(_lncc_kernel, nb, D, HW, 1.0 / win_size)

    vol_spec = pl.BlockSpec((nb, C, D, HW), lambda b: (b, 0, 0, 0))
    bhw_spec = pl.BlockSpec((HW, HW), lambda b: (0, 0))
    bdd2_spec = pl.BlockSpec((2 * R, 2 * R), lambda b: (0, 0))
    bdd3_spec = pl.BlockSpec((3 * R, 3 * R), lambda b: (0, 0))
    out_spec = pl.BlockSpec((None, 1, HW), lambda b: (b, 0, 0))

    # Explicit scoped-VMEM limit (v5e default is 16 MiB); generous but capped for v7x.
    est = (4 * nb * vol_bytes                               # double-buffered inputs
           + 2 * HW * HW * 4                                # bhw (double-buffered)
           + 2 * ((2 * R) ** 2 + (3 * R) ** 2) * 4          # block-diag D matrices
           + 4 * (4 * nb * C * D * HW + 24 * R * HW))       # f32 temps + scratch
    vmem_limit = int(min(48 << 20, max(2 * est, 32 << 20)))

    partial_sums = pl.pallas_call(
        kernel,
        out_shape=jax.ShapeDtypeStruct((G, 1, HW), jnp.float32),
        grid=(G,),
        in_specs=[vol_spec, vol_spec, bhw_spec, bdd2_spec, bdd3_spec],
        out_specs=out_spec,
        scratch_shapes=[pltpu.VMEM((3 * R, HW), jnp.float32)],
        compiler_params=pltpu.CompilerParams(
            dimension_semantics=("parallel",),
            vmem_limit_bytes=vmem_limit),
    )(yt, yp, b_hw, b_dd2, b_dd3)

    # Tiny cross-step reduction (G*HW floats) stays in the wrapper.
    return -(jnp.sum(partial_sums) / (N * D * H * W))


# ----------------------- pure-JAX reference (for check) ------------------------

def lncc_ref(y_true, y_pred, win=WIN):
    C = y_true.shape[1]
    win_size = float(np.prod(win) * C)

    def box(x):
        pads = [(0, 0), (0, 0)] + [(w // 2, w // 2) for w in win]
        xp = jnp.pad(x, pads, mode="edge")
        return lax.reduce_window(
            xp, 0.0, lax.add,
            window_dimensions=(1, C) + tuple(win),
            window_strides=(1, 1, 1, 1, 1),
            padding="VALID",
        )

    t_mean = box(y_true) / win_size
    p_mean = box(y_pred) / win_size
    tc = y_true - t_mean
    pc = y_pred - p_mean
    nom = box(tc * pc) ** 2
    den = box(tc * tc) * box(pc * pc)
    cc = jnp.clip((nom + EPS) / (den + EPS), 0.0, 1.0)
    return -jnp.mean(cc)


# ----------------------------------- main ---------------------------------------

if __name__ == "__main__":
    key = jax.random.PRNGKey(0)
    k1, k2 = jax.random.split(key)
    N, C, D, H, W = 2, 1, 16, 16, 16   # small shapes consistent with a 3-D (9,9,9) window
    y_true = jax.random.uniform(k1, (N, C, D, H, W), dtype=jnp.float32)
    y_pred = jax.random.uniform(k2, (N, C, D, H, W), dtype=jnp.float32)

    loss = jax.block_until_ready(jax.jit(lncc_loss)(y_true, y_pred))
    ref = jax.block_until_ready(jax.jit(lncc_ref)(y_true, y_pred))

    np.testing.assert_allclose(np.asarray(loss), np.asarray(ref), rtol=1e-4, atol=1e-5)
    print("KERNEL_OK")
</pallas_src>

<mosaic_0001>
module attributes {stable_mosaic.version = 11 : i64} {
  func.func @_lncc_kernel(%arg0: i32, %arg1: memref<1x1x16x256xf32, #tpu.memory_space<vmem>>, %arg2: memref<1x1x16x256xf32, #tpu.memory_space<vmem>>, %arg3: memref<256x256xf32, #tpu.memory_space<vmem>>, %arg4: memref<32x32xf32, #tpu.memory_space<vmem>>, %arg5: memref<48x48xf32, #tpu.memory_space<vmem>>, %arg6: memref<1x1x256xf32, #tpu.memory_space<vmem>>, %arg7: memref<48x256xf32, #tpu.memory_space<vmem>>) attributes {dimension_semantics = [#tpu.dimension_semantics<parallel>], iteration_bounds = array<i64: 2>, scalar_prefetch = 0 : i64, scratch_operands = 1 : i64, tpu.core_type = #tpu.core_type<tc>, window_params = [{transform_indices = @transform_0, window_bounds = array<i64: 1, 1, 16, 256>}, {transform_indices = @transform_1, window_bounds = array<i64: 1, 1, 16, 256>}, {pipeline_mode = #tpu.pipeline_mode<synchronous>, transform_indices = @transform_2, window_bounds = array<i64: 256, 256>}, {pipeline_mode = #tpu.pipeline_mode<synchronous>, transform_indices = @transform_3, window_bounds = array<i64: 32, 32>}, {pipeline_mode = #tpu.pipeline_mode<synchronous>, transform_indices = @transform_4, window_bounds = array<i64: 48, 48>}, {transform_indices = @transform_5, window_bounds = array<i64: 1, 1, 256>}]} {
    %c0 = arith.constant 0 : index
    %c0_0 = arith.constant 0 : index
    %c0_1 = arith.constant 0 : index
    %c0_2 = arith.constant 0 : index
    %0 = vector.load %arg1[%c0, %c0_0, %c0_1, %c0_2] : memref<1x1x16x256xf32, #tpu.memory_space<vmem>>, vector<1x1x16x256xf32>
    %c0_3 = arith.constant 0 : index
    %c0_4 = arith.constant 0 : index
    %c0_5 = arith.constant 0 : index
    %c0_6 = arith.constant 0 : index
    %1 = vector.load %arg2[%c0_3, %c0_4, %c0_5, %c0_6] : memref<1x1x16x256xf32, #tpu.memory_space<vmem>>, vector<1x1x16x256xf32>
    %c0_7 = arith.constant 0 : index
    %c0_8 = arith.constant 0 : index
    %2 = vector.load %arg3[%c0_7, %c0_8] : memref<256x256xf32, #tpu.memory_space<vmem>>, vector<256x256xf32>
    %cst = arith.constant dense<0.000000e+00> : vector<1x16x256xf32>
    %3 = vector.multi_reduction <add>, %0, %cst [1] : vector<1x1x16x256xf32> to vector<1x16x256xf32>
    %4 = vector.shape_cast %3 : vector<1x16x256xf32> to vector<16x256xf32>
    %cst_9 = arith.constant dense<0.000000e+00> : vector<1x16x256xf32>
    %5 = vector.multi_reduction <add>, %1, %cst_9 [1] : vector<1x1x16x256xf32> to vector<1x16x256xf32>
    %6 = vector.shape_cast %5 : vector<1x16x256xf32> to vector<16x256xf32>
    %c0_10 = arith.constant 0 : index
    %c0_11 = arith.constant 0 : index
    %7 = vector.load %arg7[%c0_10, %c0_11] : memref<48x256xf32, #tpu.memory_space<vmem>>, vector<16x256xf32>
    tpu.vector_store %arg7[%c0_10, %c0_11], %4 {strides = array<i32>} : memref<48x256xf32, #tpu.memory_space<vmem>>, vector<16x256xf32>,
    %c16 = arith.constant 16 : index
    %c0_12 = arith.constant 0 : index
    %8 = vector.load %arg7[%c16, %c0_12] : memref<48x256xf32, #tpu.memory_space<vmem>>, vector<16x256xf32>
    tpu.vector_store %arg7[%c16, %c0_12], %6 {strides = array<i32>} : memref<48x256xf32, #tpu.memory_space<vmem>>, vector<16x256xf32>,
    %c0_13 = arith.constant 0 : index
    %c0_14 = arith.constant 0 : index
    %9 = vector.load %arg7[%c0_13, %c0_14] : memref<48x256xf32, #tpu.memory_space<vmem>>, vector<32x256xf32>
    %cst_15 = arith.constant dense<0.000000e+00> : vector<32x256xf32>
    %10 = tpu.matmul %9, %2, %cst_15 {dimension_numbers = #tpu.dot_dimension_numbers<[1], [0], [0], [1], [0, 0, 1, 1], [], []>} : vector<32x256xf32>, vector<256x256xf32>, vector<32x256xf32> -> vector<32x256xf32>
    %c0_16 = arith.constant 0 : index
    %c0_17 = arith.constant 0 : index
    %11 = vector.load %arg4[%c0_16, %c0_17] : memref<32x32xf32, #tpu.memory_space<vmem>>, vector<32x32xf32>
    %cst_18 = arith.constant dense<0.000000e+00> : vector<32x256xf32>
    %12 = tpu.matmul %11, %10, %cst_18 {dimension_numbers = #tpu.dot_dimension_numbers<[1], [0], [0], [1], [0, 0, 1, 1], [], []>} : vector<32x32xf32>, vector<32x256xf32>, vector<32x256xf32> -> vector<32x256xf32>
    %13 = vector.extract_strided_slice %12 {offsets = [0, 0], sizes = [16, 256], strides = [1, 1]} : vector<32x256xf32> to vector<16x256xf32>
    %cst_19 = arith.constant 0.00137174211 : f32
    %14 = vector.broadcast %cst_19 : f32 to vector<16x256xf32>
    %15 = arith.mulf %13, %14 : vector<16x256xf32>
    %16 = vector.shape_cast %15 : vector<16x256xf32> to vector<1x1x16x256xf32>
    %17 = vector.extract_strided_slice %12 {offsets = [16, 0], sizes = [16, 256], strides = [1, 1]} : vector<32x256xf32> to vector<16x256xf32>
    %cst_20 = arith.constant 0.00137174211 : f32
    %18 = vector.broadcast %cst_20 : f32 to vector<16x256xf32>
    %19 = arith.mulf %17, %18 : vector<16x256xf32>
    %20 = vector.shape_cast %19 : vector<16x256xf32> to vector<1x1x16x256xf32>
    %21 = arith.subf %0, %16 : vector<1x1x16x256xf32>
    %22 = arith.subf %1, %20 : vector<1x1x16x256xf32>
    %23 = arith.mulf %21, %22 : vector<1x1x16x256xf32>
    %cst_21 = arith.constant dense<0.000000e+00> : vector<1x16x256xf32>
    %24 = vector.multi_reduction <add>, %23, %cst_21 [1] : vector<1x1x16x256xf32> to vector<1x16x256xf32>
    %25 = vector.shape_cast %24 : vector<1x16x256xf32> to vector<16x256xf32>
    %26 = arith.mulf %21, %21 : vector<1x1x16x256xf32>
    %cst_22 = arith.constant dense<0.000000e+00> : vector<1x16x256xf32>
    %27 = vector.multi_reduction <add>, %26, %cst_22 [1] : vector<1x1x16x256xf32> to vector<1x16x256xf32>
    %28 = vector.shape_cast %27 : vector<1x16x256xf32> to vector<16x256xf32>
    %29 = arith.mulf %22, %22 : vector<1x1x16x256xf32>
    %cst_23 = arith.constant dense<0.000000e+00> : vector<1x16x256xf32>
    %30 = vector.multi_reduction <add>, %29, %cst_23 [1] : vector<1x1x16x256xf32> to vector<1x16x256xf32>
    %31 = vector.shape_cast %30 : vector<1x16x256xf32> to vector<16x256xf32>
    %c0_24 = arith.constant 0 : index
    %c0_25 = arith.constant 0 : index
    %32 = vector.load %arg7[%c0_24, %c0_25] : memref<48x256xf32, #tpu.memory_space<vmem>>, vector<16x256xf32>
    tpu.vector_store %arg7[%c0_24, %c0_25], %25 {strides = array<i32>} : memref<48x256xf32, #tpu.memory_space<vmem>>, vector<16x256xf32>,
    %c16_26 = arith.constant 16 : index
    %c0_27 = arith.constant 0 : index
    %33 = vector.load %arg7[%c16_26, %c0_27] : memref<48x256xf32, #tpu.memory_space<vmem>>, vector<16x256xf32>
    tpu.vector_store %arg7[%c16_26, %c0_27], %28 {strides = array<i32>} : memref<48x256xf32, #tpu.memory_space<vmem>>, vector<16x256xf32>,
    %c32 = arith.constant 32 : index
    %c0_28 = arith.constant 0 : index
    %34 = vector.load %arg7[%c32, %c0_28] : memref<48x256xf32, #tpu.memory_space<vmem>>, vector<16x256xf32>
    tpu.vector_store %arg7[%c32, %c0_28], %31 {strides = array<i32>} : memref<48x256xf32, #tpu.memory_space<vmem>>, vector<16x256xf32>,
    %c0_29 = arith.constant 0 : index
    %c0_30 = arith.constant 0 : index
    %35 = vector.load %arg7[%c0_29, %c0_30] : memref<48x256xf32, #tpu.memory_space<vmem>>, vector<48x256xf32>
    %cst_31 = arith.constant dense<0.000000e+00> : vector<48x256xf32>
    %36 = tpu.matmul %35, %2, %cst_31 {dimension_numbers = #tpu.dot_dimension_numbers<[1], [0], [0], [1], [0, 0, 1, 1], [], []>} : vector<48x256xf32>, vector<256x256xf32>, vector<48x256xf32> -> vector<48x256xf32>
    %c0_32 = arith.constant 0 : index
    %c0_33 = arith.constant 0 : index
    %37 = vector.load %arg5[%c0_32, %c0_33] : memref<48x48xf32, #tpu.memory_space<vmem>>, vector<48x48xf32>
    %cst_34 = arith.constant dense<0.000000e+00> : vector<48x256xf32>
    %38 = tpu.matmul %37, %36, %cst_34 {dimension_numbers = #tpu.dot_dimension_numbers<[1], [0], [0], [1], [0, 0, 1, 1], [], []>} : vector<48x48xf32>, vector<48x256xf32>, vector<48x256xf32> -> vector<48x256xf32>
    %39 = vector.extract_strided_slice %38 {offsets = [0, 0], sizes = [16, 256], strides = [1, 1]} : vector<48x256xf32> to vector<16x256xf32>
    %40 = vector.extract_strided_slice %38 {offsets = [16, 0], sizes = [16, 256], strides = [1, 1]} : vector<48x256xf32> to vector<16x256xf32>
    %41 = vector.extract_strided_slice %38 {offsets = [32, 0], sizes = [16, 256], strides = [1, 1]} : vector<48x256xf32> to vector<16x256xf32>
    %42 = arith.mulf %39, %39 : vector<16x256xf32>
    %cst_35 = arith.constant 9.99999997E-7 : f32
    %43 = vector.broadcast %cst_35 : f32 to vector<16x256xf32>
    %44 = arith.addf %42, %43 : vector<16x256xf32>
    %45 = arith.mulf %40, %41 : vector<16x256xf32>
    %cst_36 = arith.constant 9.99999997E-7 : f32
    %46 = vector.broadcast %cst_36 : f32 to vector<16x256xf32>
    %47 = arith.addf %45, %46 : vector<16x256xf32>
    %48 = arith.divf %44, %47 : vector<16x256xf32>
    %cst_37 = arith.constant 0.000000e+00 : f32
    %cst_38 = arith.constant 1.000000e+00 : f32
    %49 = vector.broadcast %cst_37 : f32 to vector<16x256xf32>
    %50 = arith.maximumf %49, %48 : vector<16x256xf32>
    %51 = vector.broadcast %cst_38 : f32 to vector<16x256xf32>
    %52 = arith.minimumf %51, %50 : vector<16x256xf32>
    %cst_39 = arith.constant dense<0.000000e+00> : vector<256xf32>
    %53 = vector.multi_reduction <add>, %52, %cst_39 [0] : vector<16x256xf32> to vector<256xf32>
    %54 = vector.shape_cast %53 : vector<256xf32> to vector<1x256xf32>
    %c0_40 = arith.constant 0 : index
    %c0_41 = arith.constant 0 : index
    %c0_42 = arith.constant 0 : index
    %55 = vector.load %arg6[%c0_40, %c0_41, %c0_42] : memref<1x1x256xf32, #tpu.memory_space<vmem>>, vector<1x1x256xf32>
    %56 = vector.shape_cast %55 : vector<1x1x256xf32> to vector<1x256xf32>
    %57 = vector.shape_cast %54 : vector<1x256xf32> to vector<1x1x256xf32>
    tpu.vector_store %arg6[%c0_40, %c0_41, %c0_42], %57 {strides = array<i32>} : memref<1x1x256xf32, #tpu.memory_space<vmem>>, vector<1x1x256xf32>,
    return
  }
  func.func @transform_0(%arg0: i32) -> (i32, i32, i32, i32) {
    %c0_i32 = arith.constant 0 : i32
    %c0_i32_0 = arith.constant 0 : i32
    %c0_i32_1 = arith.constant 0 : i32
    %c0_i32_2 = arith.constant 0 : i32
    return %arg0, %c0_i32, %c0_i32_0, %c0_i32_1 : i32, i32, i32, i32
  }
  func.func @transform_1(%arg0: i32) -> (i32, i32, i32, i32) {
    %c0_i32 = arith.constant 0 : i32
    %c0_i32_0 = arith.constant 0 : i32
    %c0_i32_1 = arith.constant 0 : i32
    %c0_i32_2 = arith.constant 0 : i32
    return %arg0, %c0_i32, %c0_i32_0, %c0_i32_1 : i32, i32, i32, i32
  }
  func.func @transform_2(%arg0: i32) -> (i32, i32) {
    %c0_i32 = arith.constant 0 : i32
    %c0_i32_0 = arith.constant 0 : i32
    %c0_i32_1 = arith.constant 0 : i32
    return %c0_i32, %c0_i32_0 : i32, i32
  }
  func.func @transform_3(%arg0: i32) -> (i32, i32) {
    %c0_i32 = arith.constant 0 : i32
    %c0_i32_0 = arith.constant 0 : i32
    %c0_i32_1 = arith.constant 0 : i32
    return %c0_i32, %c0_i32_0 : i32, i32
  }
  func.func @transform_4(%arg0: i32) -> (i32, i32) {
    %c0_i32 = arith.constant 0 : i32
    %c0_i32_0 = arith.constant 0 : i32
    %c0_i32_1 = arith.constant 0 : i32
    return %c0_i32, %c0_i32_0 : i32, i32
  }
  func.func @transform_5(%arg0: i32) -> (i32, i32, i32) {
    %c0_i32 = arith.constant 0 : i32
    %c0_i32_0 = arith.constant 0 : i32
    %c0_i32_1 = arith.constant 0 : i32
    return %arg0, %c0_i32, %c0_i32_0 : i32, i32, i32
  }
}

</mosaic_0001>

<llo_original>
// kernel: lncc_loss.1
$region0: #{lncc_loss.1}
  #allocation0 [shape = 'u32[]', space=smem, size = 0x4, offset = 0x4, fixed_abs, tag = 'smem constant byte address 0x4 - core index']
  #allocation1 [shape = 'u32[144,128]{1,0:T(1,128)}', space=vmem, size = 0x12000, scoped, tag = 'internal scratch']
  #allocation2 [shape = 'f32[48,256]{1,0:T(8,128)}', space=vmem, size = 0xc000, scoped, tag = 'scratch operand']
  %s0 = inlined_call_operand.vmem [shape: f32[2,1,16,256], index: 0, kind: input, shape index: {}]
  %s1 = inlined_call_operand.vmem [shape: f32[2,1,16,256], index: 1, kind: input, shape index: {}]
  %s2 = inlined_call_operand.vmem [shape: f32[256,256], index: 2, kind: input, shape index: {}]
  %s3 = inlined_call_operand.vmem [shape: f32[32,32], index: 3, kind: input, shape index: {}]
  %s4 = inlined_call_operand.vmem [shape: f32[48,48], index: 4, kind: input, shape index: {}]
  %s5 = inlined_call_operand.vmem [shape: f32[2,1,256], index: 5, kind: output, shape index: {}]
  %s6 = sld [smem:[#allocation0]]
  $region53: #{lncc_loss.1} parent=0
    _
  %s8 = ssub.s32 1, %s6
  %s9 = scalar_select 0, %s8, %s6
  loop: start=0, step=1, limit=4
  $region2: #{lncc_loss.1} parent=0 // loop_pre_header
    _
  $region3: #{lncc_loss.1} parent=0 // loop_header
    %s11 = sphi 0, %s15
    %p12 = scmp.ge.s32.totalorder %s11, 4
    %s21 = sphi 0, %s23
    %s24 = sphi 0, %s21
    %s25 = sphi 0, %s24
    %s41 = sphi 0, %s25
    %s47 = sphi 0, %s49
    %s50 = sphi 0, %s47
    %s51 = sphi 0, %s50
    %s67 = sphi 0, %s51
    %s71 = sphi 0, %s71
    %s73 = sphi 0, %s71
    %s74 = sphi 0, %s73
    %s88 = sphi 0, %s74
    %s92 = sphi 0, %s92
    %s94 = sphi 0, %s92
    %s95 = sphi 0, %s94
    %s109 = sphi 0, %s95
    %s113 = sphi 0, %s113
    %s115 = sphi 0, %s113
    %s116 = sphi 0, %s115
    %s130 = sphi 0, %s116
    %s136 = sphi 0, %s138
    %s139 = sphi 0, %s136
    %s140 = sphi 0, %s139
    %s156 = sphi 0, %s140
  $region4: #{lncc_loss.1} parent=0 // loop_header_branch
    %14 = sbr.rel (%p12) target = $region8
  $region5: #{lncc_loss.1} parent=0 // loop_body
    %s16 = ssub.s32 %s11, 1
    %s17 = ssub.s32 %s11, 2
    %s18 = sadd.s32 %s11, 1
    %s19 = ssub.s32 %s11, %s18
    %p20 = scmp.eq.s32.totalorder %s19, 0
    %s22 = sadd.s32 %s21, 1
    %s23 = scalar_select %p20, %s21, %s22
    %p26 = pneg %p20
    %p27 = scmp.eq.s32.totalorder %s11, 1
    %p28 = por %p26, %p27
    %p29 = scmp.ne.s32.totalorder %s21, %s24
    %p30 = scmp.eq.s32.totalorder %s11, 0
    %p31 = por %p29, %p30
    %p32 = scmp.ne.s32.totalorder %s21, %s24
    %p33 = scmp.eq.s32.totalorder %s16, 1
    %p34 = por %p32, %p33
    %p35 = scmp.ne.s32.totalorder %s24, %s25
    %p36 = scmp.eq.s32.totalorder %s16, 0
    %p37 = por %p35, %p36
    %p38 = scmp.ne.s32.totalorder %s24, %s25
    %p39 = scmp.eq.s32.totalorder %s17, 1
    %p40 = por %p38, %p39
    %p42 = scmp.ne.s32.totalorder %s25, %s41
    %p43 = scmp.eq.s32.totalorder %s17, 0
    %p44 = por %p42, %p43
    %s45 = ssub.s32 %s11, %s18
    %p46 = scmp.eq.s32.totalorder %s45, 0
    %s48 = sadd.s32 %s47, 1
    %s49 = scalar_select %p46, %s47, %s48
    %p52 = pneg %p46
    %p53 = scmp.eq.s32.totalorder %s11, 1
    %p54 = por %p52, %p53
    %p55 = scmp.ne.s32.totalorder %s47, %s50
    %p56 = scmp.eq.s32.totalorder %s11, 0
    %p57 = por %p55, %p56
    %p58 = scmp.ne.s32.totalorder %s47, %s50
    %p59 = scmp.eq.s32.totalorder %s16, 1
    %p60 = por %p58, %p59
    %p61 = scmp.ne.s32.totalorder %s50, %s51
    %p62 = scmp.eq.s32.totalorder %s16, 0
    %p63 = por %p61, %p62
    %p64 = scmp.ne.s32.totalorder %s50, %s51
    %p65 = scmp.eq.s32.totalorder %s17, 1
    %p66 = por %p64, %p65
    %p68 = scmp.ne.s32.totalorder %s51, %s67
    %p69 = scmp.eq.s32.totalorder %s17, 0
    %p70 = por %p68, %p69
    %s72 = sadd.s32 %s71, 1
    %p75 = scmp.eq.s32.totalorder %s11, 1
    %p76 = scmp.ne.s32.totalorder %s71, %s73
    %p77 = scmp.eq.s32.totalorder %s11, 0
    %p78 = por %p76, %p77
    %p79 = scmp.ne.s32.totalorder %s71, %s73
    %p80 = scmp.eq.s32.totalorder %s16, 1
    %p81 = por %p79, %p80
    %p82 = scmp.ne.s32.totalorder %s73, %s74
    %p83 = scmp.eq.s32.totalorder %s16, 0
    %p84 = por %p82, %p83
    %p85 = scmp.ne.s32.totalorder %s73, %s74
    %p86 = scmp.eq.s32.totalorder %s17, 1
    %p87 = por %p85, %p86
    %p89 = scmp.ne.s32.totalorder %s74, %s88
    %p90 = scmp.eq.s32.totalorder %s17, 0
    %p91 = por %p89, %p90
    %s93 = sadd.s32 %s92, 1
    %p96 = scmp.eq.s32.totalorder %s11, 1
    %p97 = scmp.ne.s32.totalorder %s92, %s94
    %p98 = scmp.eq.s32.totalorder %s11, 0
    %p99 = por %p97, %p98
    %p100 = scmp.ne.s32.totalorder %s92, %s94
    %p101 = scmp.eq.s32.totalorder %s16, 1
    %p102 = por %p100, %p101
    %p103 = scmp.ne.s32.totalorder %s94, %s95
    %p104 = scmp.eq.s32.totalorder %s16, 0
    %p105 = por %p103, %p104
    %p106 = scmp.ne.s32.totalorder %s94, %s95
    %p107 = scmp.eq.s32.totalorder %s17, 1
    %p108 = por %p106, %p107
    %p110 = scmp.ne.s32.totalorder %s95, %s109
    %p111 = scmp.eq.s32.totalorder %s17, 0
    %p112 = por %p110, %p111
    %s114 = sadd.s32 %s113, 1
    %p117 = scmp.eq.s32.totalorder %s11, 1
    %p118 = scmp.ne.s32.totalorder %s113, %s115
    %p119 = scmp.eq.s32.totalorder %s11, 0
    %p120 = por %p118, %p119
    %p121 = scmp.ne.s32.totalorder %s113, %s115
    %p122 = scmp.eq.s32.totalorder %s16, 1
    %p123 = por %p121, %p122
    %p124 = scmp.ne.s32.totalorder %s115, %s116
    %p125 = scmp.eq.s32.totalorder %s16, 0
    %p126 = por %p124, %p125
    %p127 = scmp.ne.s32.totalorder %s115, %s116
    %p128 = scmp.eq.s32.totalorder %s17, 1
    %p129 = por %p127, %p128
    %p131 = scmp.ne.s32.totalorder %s116, %s130
    %p132 = scmp.eq.s32.totalorder %s17, 0
    %p133 = por %p131, %p132
    %s134 = ssub.s32 %s11, %s18
    %p135 = scmp.eq.s32.totalorder %s134, 0
    %s137 = sadd.s32 %s136, 1
    %s138 = scalar_select %p135, %s136, %s137
    %p141 = pneg %p135
    %p142 = scmp.eq.s32.totalorder %s11, 1
    %p143 = por %p141, %p142
    %p144 = scmp.ne.s32.totalorder %s136, %s139
    %p145 = scmp.eq.s32.totalorder %s11, 0
    %p146 = por %p144, %p145
    %p147 = scmp.ne.s32.totalorder %s136, %s139
    %p148 = scmp.eq.s32.totalorder %s16, 1
    %p149 = por %p147, %p148
    %p150 = scmp.ne.s32.totalorder %s139, %s140
    %p151 = scmp.eq.s32.totalorder %s16, 0
    %p152 = por %p150, %p151
    %p153 = scmp.ne.s32.totalorder %s139, %s140
    %p154 = scmp.eq.s32.totalorder %s17, 1
    %p155 = por %p153, %p154
    %p157 = scmp.ne.s32.totalorder %s140, %s156
    %p158 = scmp.eq.s32.totalorder %s17, 0
    %p159 = por %p157, %p158
    %p160 = scmp.le.s32.totalorder 1, %s11
    %p161 = scmp.lt.s32.totalorder %s11, 3
    %p162 = pnand %p160, %p161
    %p163 = pneg %p162
    // Predicated region
    $region9: #{lncc_loss.1} parent=5 // pred_check
      _
    $region10: #{lncc_loss.1} parent=5 // pred_check_branch
      %165 = sbr.rel (%p162) target = $region12
    $region11: #{lncc_loss.1} parent=5 // pred_region
      %s166 = ssub.s32 %s11, 1
      // Predicated region
      $region13: #{lncc_loss.1} parent=11 // pred_check
        %p167 = pneg %p84
      $region14: #{lncc_loss.1} parent=11 // pred_check_branch
        %169 = sbr.rel (%p167) target = $region16
      $region15: #{lncc_loss.1} parent=11 // pred_region
        _
      $region16: #{lncc_loss.1} parent=11 // pred_fallthru
        _
      // Predicated region
      $region17: #{lncc_loss.1} parent=11 // pred_check
        %p170 = pneg %p105
      $region18: #{lncc_loss.1} parent=11 // pred_check_branch
        %172 = sbr.rel (%p170) target = $region20
      $region19: #{lncc_loss.1} parent=11 // pred_region
        _
      $region20: #{lncc_loss.1} parent=11 // pred_fallthru
        _
      // Predicated region
      $region21: #{lncc_loss.1} parent=11 // pred_check
        %p173 = pneg %p126
      $region22: #{lncc_loss.1} parent=11 // pred_check_branch
        %175 = sbr.rel (%p173) target = $region24
      $region23: #{lncc_loss.1} parent=11 // pred_region
        _
      $region24: #{lncc_loss.1} parent=11 // pred_fallthru
        _
    $region12: #{lncc_loss.1} parent=5 // pred_fallthru
      _
    %p176 = scmp.lt.s32.totalorder %s11, 2
    // Predicated region
    $region25: #{lncc_loss.1} parent=5 // pred_check
      %p177 = pneg %p176
    $region26: #{lncc_loss.1} parent=5 // pred_check_branch
      %179 = sbr.rel (%p177) target = $region28
    $region27: #{lncc_loss.1} parent=5 // pred_region
      // Predicated region
      $region29: #{lncc_loss.1} parent=27 // pred_check
        %p180 = pneg %p31
      $region30: #{lncc_loss.1} parent=27 // pred_check_branch
        %182 = sbr.rel (%p180) target = $region32
      $region31: #{lncc_loss.1} parent=27 // pred_region
        %p183 = scmp.lt.s32.totalorder %s11, 1
        %s184 = scalar_select %p183, %s11, 1
        %s185 = smul.addr %s184, 4
        %s186 = smul.addr %s185, 8
        %s187 = scalar_lea.vmem %s0, %s186
      $region32: #{lncc_loss.1} parent=27 // pred_fallthru
        _
      // Predicated region
      $region33: #{lncc_loss.1} parent=27 // pred_check
        %p188 = pneg %p57
      $region34: #{lncc_loss.1} parent=27 // pred_check_branch
        %190 = sbr.rel (%p188) target = $region36
      $region35: #{lncc_loss.1} parent=27 // pred_region
        %p191 = scmp.lt.s32.totalorder %s11, 1
        %s192 = scalar_select %p191, %s11, 1
        %s193 = smul.addr %s192, 4
        %s194 = smul.addr %s193, 8
        %s195 = scalar_lea.vmem %s1, %s194
      $region36: #{lncc_loss.1} parent=27 // pred_fallthru
        _
    $region28: #{lncc_loss.1} parent=5 // pred_fallthru
      _
    %p196 = scmp.le.s32.totalorder 1, %s11
    %p197 = scmp.lt.s32.totalorder %s11, 3
    %p198 = pnand %p196, %p197
    %p199 = pneg %p198
    // Predicated region
    $region37: #{lncc_loss.1} parent=5 // pred_check
      _
    $region38: #{lncc_loss.1} parent=5 // pred_check_branch
      %201 = sbr.rel (%p198) target = $region40
    $region39: #{lncc_loss.1} parent=5 // pred_region
      %s202 = ssub.s32 %s11, 1
      %p203 = scmp.lt.s32.totalorder %s16, 1
      %s204 = scalar_select %p203, %s16, 1
      %s205 = smul.addr %s204, 4
      %s206 = smul.addr %s205, 8
      %s207 = scalar_lea.vmem %s0, %s206
      %p208 = pneg %p37
      %p209 = pneg %p34
      %p210 = scmp.lt.s32.totalorder %s16, 1
      %s211 = scalar_select %p210, %s16, 1
      %s212 = smul.addr %s211, 4
      %s213 = smul.addr %s212, 8
      %s214 = scalar_lea.vmem %s1, %s213
      %p215 = pneg %p63
      %p216 = pneg %p60
      %p217 = pneg %p84
      %p218 = pneg %p81
      %p219 = pneg %p105
      %p220 = pneg %p102
      %p221 = pneg %p126
      %p222 = pneg %p123
      %p223 = pneg %p152
      %p224 = pneg %p149
      %p225 = scmp.lt.s32.totalorder %s16, 1
      %s226 = scalar_select %p225, %s16, 1
      %s227 = smul.addr %s226, 2
      %s228 = scalar_lea.vmem %s5, %s227
      %p229 = scmp.lt.s32.totalorder %s16, 1
      %s230 = scalar_select %p229, %s16, 1
      %s231 = smul.addr %s230, 4
      %s232 = smul.addr %s231, 8
      %s233 = scalar_lea.vmem %s0, %s232
      %p234 = scmp.lt.s32.totalorder %s16, 1
      %s235 = scalar_select %p234, %s16, 1
      %s236 = smul.addr %s235, 4
      %s237 = smul.addr %s236, 8
      %s238 = scalar_lea.vmem %s1, %s237
      %p239 = scmp.lt.s32.totalorder %s16, 1
      %s240 = scalar_select %p239, %s16, 1
      %s241 = smul.addr %s240, 2
      %s242 = scalar_lea.vmem %s5, %s241
      %v243 = vld [vmem:[%s233] sm:$0xff]
      %v244 = vld [vmem:[%s233 + $0x8] sm:$0xff]
      %v245 = vld [vmem:[%s233 + $0x10] sm:$0xff]
      %v246 = vld [vmem:[%s233 + $0x18] sm:$0xff]
      %v247 = vld [vmem:[%s238] sm:$0xff]
      %v248 = vld [vmem:[%s238 + $0x8] sm:$0xff]
      %v249 = vld [vmem:[%s238 + $0x10] sm:$0xff]
      %v250 = vld [vmem:[%s238 + $0x18] sm:$0xff]
      %v251 = vld [vmem:[%s2] sm:$0xff]
      %v252 = vld [vmem:[%s2 + $0x8] sm:$0xff]
      %v253 = vld [vmem:[%s2 + $0x10] sm:$0xff]
      %v254 = vld [vmem:[%s2 + $0x18] sm:$0xff]
      %v255 = vld [vmem:[%s2 + $0x20] sm:$0xff]
      %v256 = vld [vmem:[%s2 + $0x28] sm:$0xff]
      %v257 = vld [vmem:[%s2 + $0x30] sm:$0xff]
      %v258 = vld [vmem:[%s2 + $0x38] sm:$0xff]
      %v259 = vld [vmem:[%s2 + $0x40] sm:$0xff]
      %v260 = vld [vmem:[%s2 + $0x48] sm:$0xff]
      %v261 = vld [vmem:[%s2 + $0x50] sm:$0xff]
      %v262 = vld [vmem:[%s2 + $0x58] sm:$0xff]
      %v263 = vld [vmem:[%s2 + $0x60] sm:$0xff]
      %v264 = vld [vmem:[%s2 + $0x68] sm:$0xff]
      %v265 = vld [vmem:[%s2 + $0x70] sm:$0xff]
      %v266 = vld [vmem:[%s2 + $0x78] sm:$0xff]
      %v267 = vld [vmem:[%s2 + $0x80] sm:$0xff]
      %v268 = vld [vmem:[%s2 + $0x88] sm:$0xff]
      %v269 = vld [vmem:[%s2 + $0x90] sm:$0xff]
      %v270 = vld [vmem:[%s2 + $0x98] sm:$0xff]
      %v271 = vld [vmem:[%s2 + $0xa0] sm:$0xff]
      %v272 = vld [vmem:[%s2 + $0xa8] sm:$0xff]
      %v273 = vld [vmem:[%s2 + $0xb0] sm:$0xff]
      %v274 = vld [vmem:[%s2 + $0xb8] sm:$0xff]
      %v275 = vld [vmem:[%s2 + $0xc0] sm:$0xff]
      %v276 = vld [vmem:[%s2 + $0xc8] sm:$0xff]
      %v277 = vld [vmem:[%s2 + $0xd0] sm:$0xff]
      %v278 = vld [vmem:[%s2 + $0xd8] sm:$0xff]
      %v279 = vld [vmem:[%s2 + $0xe0] sm:$0xff]
      %v280 = vld [vmem:[%s2 + $0xe8] sm:$0xff]
      %v281 = vld [vmem:[%s2 + $0xf0] sm:$0xff]
      %v282 = vld [vmem:[%s2 + $0xf8] sm:$0xff]
      %v283 = vld [vmem:[%s2 + $0x100] sm:$0xff]
      %v284 = vld [vmem:[%s2 + $0x108] sm:$0xff]
      %v285 = vld [vmem:[%s2 + $0x110] sm:$0xff]
      %v286 = vld [vmem:[%s2 + $0x118] sm:$0xff]
      %v287 = vld [vmem:[%s2 + $0x120] sm:$0xff]
      %v288 = vld [vmem:[%s2 + $0x128] sm:$0xff]
      %v289 = vld [vmem:[%s2 + $0x130] sm:$0xff]
      %v290 = vld [vmem:[%s2 + $0x138] sm:$0xff]
      %v291 = vld [vmem:[%s2 + $0x140] sm:$0xff]
      %v292 = vld [vmem:[%s2 + $0x148] sm:$0xff]
      %v293 = vld [vmem:[%s2 + $0x150] sm:$0xff]
      %v294 = vld [vmem:[%s2 + $0x158] sm:$0xff]
      %v295 = vld [vmem:[%s2 + $0x160] sm:$0xff]
      %v296 = vld [vmem:[%s2 + $0x168] sm:$0xff]
      %v297 = vld [vmem:[%s2 + $0x170] sm:$0xff]
      %v298 = vld [vmem:[%s2 + $0x178] sm:$0xff]
      %v299 = vld [vmem:[%s2 + $0x180] sm:$0xff]
      %v300 = vld [vmem:[%s2 + $0x188] sm:$0xff]
      %v301 = vld [vmem:[%s2 + $0x190] sm:$0xff]
      %v302 = vld [vmem:[%s2 + $0x198] sm:$0xff]
      %v303 = vld [vmem:[%s2 + $0x1a0] sm:$0xff]
      %v304 = vld [vmem:[%s2 + $0x1a8] sm:$0xff]
      %v305 = vld [vmem:[%s2 + $0x1b0] sm:$0xff]
      %v306 = vld [vmem:[%s2 + $0x1b8] sm:$0xff]
      %v307 = vld [vmem:[%s2 + $0x1c0] sm:$0xff]
      %v308 = vld [vmem:[%s2 + $0x1c8] sm:$0xff]
      %v309 = vld [vmem:[%s2 + $0x1d0] sm:$0xff]
      %v310 = vld [vmem:[%s2 + $0x1d8] sm:$0xff]
      %v311 = vld [vmem:[%s2 + $0x1e0] sm:$0xff]
      %v312 = vld [vmem:[%s2 + $0x1e8] sm:$0xff]
      %v313 = vld [vmem:[%s2 + $0x1f0] sm:$0xff]
      %v314 = vld [vmem:[%s2 + $0x1f8] sm:$0xff]
      %v315 = vadd.f32 %v243, 0.0
      %v316 = vadd.f32 %v244, 0.0
      %v317 = vadd.f32 %v245, 0.0
      %v318 = vadd.f32 %v246, 0.0
      %v319 = vadd.f32 %v247, 0.0
      %v320 = vadd.f32 %v248, 0.0
      %v321 = vadd.f32 %v249, 0.0
      %v322 = vadd.f32 %v250, 0.0
      %323 = vst [vmem:[#allocation2] sm:$0xff] %v315
      %324 = vst [vmem:[#allocation2 + $0x8] sm:$0xff] %v316
      %325 = vst [vmem:[#allocation2 + $0x10] sm:$0xff] %v317
      %326 = vst [vmem:[#allocation2 + $0x18] sm:$0xff] %v318
      %327 = vst [vmem:[#allocation2 + $0x20] sm:$0xff] %v319
      %328 = vst [vmem:[#allocation2 + $0x28] sm:$0xff] %v320
      %329 = vst [vmem:[#allocation2 + $0x30] sm:$0xff] %v321
      %330 = vst [vmem:[#allocation2 + $0x38] sm:$0xff] %v322
      %v331 = vld [vmem:[#allocation2] sm:$0xff]
      %v332 = vld [vmem:[#allocation2 + $0x8] sm:$0xff]
      %v333 = vld [vmem:[#allocation2 + $0x10] sm:$0xff]
      %v334 = vld [vmem:[#allocation2 + $0x18] sm:$0xff]
      %v335 = vld [vmem:[#allocation2 + $0x20] sm:$0xff]
      %v336 = vld [vmem:[#allocation2 + $0x28] sm:$0xff]
      %v337 = vld [vmem:[#allocation2 + $0x30] sm:$0xff]
      %v338 = vld [vmem:[#allocation2 + $0x38] sm:$0xff]
      %339 = vmatprep.subr.mxu0 %v252
      %340 = vmatpush1.msra.mxu0 %v251
      %341 = vmatprep.subr.mxu0 %v254
      %342 = vmatpush1.msra.mxu0 %v253
      %343 = vmatprep.subr.mxu0 %v256
      %344 = vmatpush1.msra.mxu0 %v255
      %345 = vmatprep.subr.mxu0 %v258
      %346 = vmatpush1.msra.mxu0 %v257
      %347 = vmatprep.subr.mxu0 %v260
      %348 = vmatpush1.msra.mxu0 %v259
      %349 = vmatprep.subr.mxu0 %v262
      %350 = vmatpush1.msra.mxu0 %v261
      %351 = vmatprep.subr.mxu0 %v264
      %352 = vmatpush1.msra.mxu0 %v263
      %353 = vmatprep.subr.mxu0 %v266
      %354 = vmatpush1.msra.mxu0 %v265
      %355 = vmatprep.subr.mxu0 %v268
      %356 = vmatpush1.msra.mxu0 %v267
      %357 = vmatprep.subr.mxu0 %v270
      %358 = vmatpush1.msra.mxu0 %v269
      %359 = vmatprep.subr.mxu0 %v272
      %360 = vmatpush1.msra.mxu0 %v271
      %361 = vmatprep.subr.mxu0 %v274
      %362 = vmatpush1.msra.mxu0 %v273
      %363 = vmatprep.subr.mxu0 %v276
      %364 = vmatpush1.msra.mxu0 %v275
      %365 = vmatprep.subr.mxu0 %v278
      %366 = vmatpush1.msra.mxu0 %v277
      %367 = vmatprep.subr.mxu0 %v280
      %368 = vmatpush1.msra.mxu0 %v279
      %369 = vmatprep.subr.mxu0 %v282
      %370 = vmatpush1.msra.mxu0 %v281
      %371 = vmatprep.subr.mxu0 %v284
      %372 = vmatpush1.msra.mxu0 %v283
      %373 = vmatprep.subr.mxu0 %v286
      %374 = vmatpush1.msra.mxu0 %v285
      %375 = vmatprep.subr.mxu0 %v288
      %376 = vmatpush1.msra.mxu0 %v287
      %377 = vmatprep.subr.mxu0 %v290
      %378 = vmatpush1.msra.mxu0 %v289
      %379 = vmatprep.subr.mxu0 %v292
      %380 = vmatpush1.msra.mxu0 %v291
      %381 = vmatprep.subr.mxu0 %v294
      %382 = vmatpush1.msra.mxu0 %v293
      %383 = vmatprep.subr.mxu0 %v296
      %384 = vmatpush1.msra.mxu0 %v295
      %385 = vmatprep.subr.mxu0 %v298
      %386 = vmatpush1.msra.mxu0 %v297
      %387 = vmatprep.subr.mxu0 %v300
      %388 = vmatpush1.msra.mxu0 %v299
      %389 = vmatprep.subr.mxu0 %v302
      %390 = vmatpush1.msra.mxu0 %v301
      %391 = vmatprep.subr.mxu0 %v304
      %392 = vmatpush1.msra.mxu0 %v303
      %393 = vmatprep.subr.mxu0 %v306
      %394 = vmatpush1.msra.mxu0 %v305
      %395 = vmatprep.subr.mxu0 %v308
      %396 = vmatpush1.msra.mxu0 %v307
      %397 = vmatprep.subr.mxu0 %v310
      %398 = vmatpush1.msra.mxu0 %v309
      %399 = vmatprep.subr.mxu0 %v312
      %400 = vmatpush1.msra.mxu0 %v311
      %401 = vmatprep.subr.mxu0 %v314
      %402 = vmatpush1.msra.mxu0 %v313
      %403 = vmatprep.mubr.f32.mxu0 %v332
      %404 = vmatmul.mubr.f32.gmra.mrb[0].mxu0 %v331
      %v405 = vpop.f32.mrb[0].mxu0
      %v406 = vadd.f32 0.0, %v405
      %v407 = vpop.f32.mrb[0].mxu0
      %v408 = vadd.f32 0.0, %v407
      %409 = vmatprep.mubr.f32.mxu0 %v334
      %410 = vmatmul.mubr.f32.gmra.mrb[0].mxu0 %v333
      %v411 = vpop.f32.mrb[0].mxu0
      %v412 = vadd.f32 0.0, %v411
      %v413 = vpop.f32.mrb[0].mxu0
      %v414 = vadd.f32 0.0, %v413
      %415 = vmatprep.mubr.f32.mxu0 %v336
      %416 = vmatmul.mubr.f32.gmra.mrb[0].mxu0 %v335
      %v417 = vpop.f32.mrb[0].mxu0
      %v418 = vadd.f32 0.0, %v417
      %v419 = vpop.f32.mrb[0].mxu0
      %v420 = vadd.f32 0.0, %v419
      %421 = vmatprep.mubr.f32.mxu0 %v338
      %422 = vmatmul.mubr.f32.gmra.mrb[0].mxu0 %v337
      %v423 = vpop.f32.mrb[0].mxu0
      %v424 = vadd.f32 0.0, %v423
      %v425 = vpop.f32.mrb[0].mxu0
      %v426 = vadd.f32 0.0, %v425
      %427 = vdwg.mxu0
      %v428 = vld [vmem:[%s3] sm:$0xff]
      %v429 = vld [vmem:[%s3 + $0x8] sm:$0xff]
      %v430 = vld [vmem:[%s3 + $0x10] sm:$0xff]
      %v431 = vld [vmem:[%s3 + $0x18] sm:$0xff]
      %vm432 = vcmask 261120
      %v434 = vsel %vm432, %v428, 0
      %v437 = vsel %vm432, %v429, 0
      %v440 = vsel %vm432, %v430, 0
      %v443 = vsel %vm432, %v431, 0
      %445 = vmatprep.subr.mxu0 %v408
      %446 = vmatpush1.msra.mxu0 %v406
      %447 = vmatprep.subr.mxu0 %v414
      %448 = vmatpush1.msra.mxu0 %v412
      %449 = vmatprep.subr.mxu0 %v420
      %450 = vmatpush1.msra.mxu0 %v418
      %451 = vmatprep.subr.mxu0 %v426
      %452 = vmatpush1.msra.mxu0 %v424
      %453 = vmatprep.subr.mxu0 0.0
      %454 = vmatpush1.msra.mxu0 0.0
      %455 = vmatprep.subr.mxu0 0.0
      %456 = vmatpush1.msra.mxu0 0.0
      %457 = vmatprep.subr.mxu0 0.0
      %458 = vmatpush1.msra.mxu0 0.0
      %459 = vmatprep.subr.mxu0 0.0
      %460 = vmatpush1.msra.mxu0 0.0
      %461 = vmatprep.subr.mxu0 0.0
      %462 = vmatpush1.msra.mxu0 0.0
      %463 = vmatprep.subr.mxu0 0.0
      %464 = vmatpush1.msra.mxu0 0.0
      %465 = vmatprep.subr.mxu0 0.0
      %466 = vmatpush1.msra.mxu0 0.0
      %467 = vmatprep.subr.mxu0 0.0
      %468 = vmatpush1.msra.mxu0 0.0
      %469 = vmatprep.subr.mxu0 0.0
      %470 = vmatpush1.msra.mxu0 0.0
      %471 = vmatprep.subr.mxu0 0.0
      %472 = vmatpush1.msra.mxu0 0.0
      %473 = vmatprep.subr.mxu0 0.0
      %474 = vmatpush1.msra.mxu0 0.0
      %475 = vmatprep.subr.mxu0 0.0
      %476 = vmatpush1.msra.mxu0 0.0
      %477 = vmatprep.subr.mxu0 0.0
      %478 = vmatpush1.msra.mxu0 0.0
      %479 = vmatprep.subr.mxu0 0.0
      %480 = vmatpush1.msra.mxu0 0.0
      %481 = vmatprep.subr.mxu0 0.0
      %482 = vmatpush1.msra.mxu0 0.0
      %483 = vmatprep.subr.mxu0 0.0
      %484 = vmatpush1.msra.mxu0 0.0
      %485 = vmatprep.subr.mxu0 0.0
      %486 = vmatpush1.msra.mxu0 0.0
      %487 = vmatprep.subr.mxu0 0.0
      %488 = vmatpush1.msra.mxu0 0.0
      %489 = vmatprep.subr.mxu0 0.0
      %490 = vmatpush1.msra.mxu0 0.0
      %491 = vmatprep.subr.mxu0 0.0
      %492 = vmatpush1.msra.mxu0 0.0
      %493 = vmatprep.subr.mxu0 0.0
      %494 = vmatpush1.msra.mxu0 0.0
      %495 = vmatprep.subr.mxu0 0.0
      %496 = vmatpush1.msra.mxu0 0.0
      %497 = vmatprep.subr.mxu0 0.0
      %498 = vmatpush1.msra.mxu0 0.0
      %499 = vmatprep.subr.mxu0 0.0
      %500 = vmatpush1.msra.mxu0 0.0
      %501 = vmatprep.subr.mxu0 0.0
      %502 = vmatpush1.msra.mxu0 0.0
      %503 = vmatprep.subr.mxu0 0.0
      %504 = vmatpush1.msra.mxu0 0.0
      %505 = vmatprep.subr.mxu0 0.0
      %506 = vmatpush1.msra.mxu0 0.0
      %507 = vmatprep.subr.mxu0 0.0
      %508 = vmatpush1.msra.mxu0 0.0
      %509 = vmatprep.mubr.f32.mxu0 0.0
      %510 = vmatmul.mubr.f32.gmra.mrb[0].mxu0 %v434
      %v511 = vpop.f32.mrb[0].mxu0
      %v512 = vadd.f32 0.0, %v511
      %v513 = vpop.f32.mrb[0].mxu0
      %v514 = vadd.f32 0.0, %v513
      %515 = vmatprep.mubr.f32.mxu0 0.0
      %516 = vmatmul.mubr.f32.gmra.mrb[0].mxu0 %v437
      %v517 = vpop.f32.mrb[0].mxu0
      %v518 = vadd.f32 0.0, %v517
      %v519 = vpop.f32.mrb[0].mxu0
      %v520 = vadd.f32 0.0, %v519
      %521 = vmatprep.mubr.f32.mxu0 0.0
      %522 = vmatmul.mubr.f32.gmra.mrb[0].mxu0 %v440
      %v523 = vpop.f32.mrb[0].mxu0
      %v524 = vadd.f32 0.0, %v523
      %v525 = vpop.f32.mrb[0].mxu0
      %v526 = vadd.f32 0.0, %v525
      %527 = vmatprep.mubr.f32.mxu0 0.0
      %528 = vmatmul.mubr.f32.gmra.mrb[0].mxu0 %v443
      %v529 = vpop.f32.mrb[0].mxu0
      %v530 = vadd.f32 0.0, %v529
      %v531 = vpop.f32.mrb[0].mxu0
      %v532 = vadd.f32 0.0, %v531
      %533 = vdwg.mxu0
      %v534 = vmul.f32 %v512, 0.0013717421
      %v535 = vmul.f32 %v514, 0.0013717421
      %v536 = vmul.f32 %v518, 0.0013717421
      %v537 = vmul.f32 %v520, 0.0013717421
      %v538 = vmul.f32 %v524, 0.0013717421
      %v539 = vmul.f32 %v526, 0.0013717421
      %v540 = vmul.f32 %v530, 0.0013717421
      %v541 = vmul.f32 %v532, 0.0013717421
      %v542 = vsub.f32 %v243, %v534
      %v543 = vsub.f32 %v244, %v535
      %v544 = vsub.f32 %v245, %v536
      %v545 = vsub.f32 %v246, %v537
      %v546 = vsub.f32 %v247, %v538
      %v547 = vsub.f32 %v248, %v539
      %v548 = vsub.f32 %v249, %v540
      %v549 = vsub.f32 %v250, %v541
      %v550 = vmul.f32 %v542, %v546
      %v551 = vmul.f32 %v543, %v547
      %v552 = vmul.f32 %v544, %v548
      %v553 = vmul.f32 %v545, %v549
      %v554 = vadd.f32 %v550, 0.0
      %v555 = vadd.f32 %v551, 0.0
      %v556 = vadd.f32 %v552, 0.0
      %v557 = vadd.f32 %v553, 0.0
      %v558 = vmul.f32 %v542, %v542
      %v559 = vmul.f32 %v543, %v543
      %v560 = vmul.f32 %v544, %v544
      %v561 = vmul.f32 %v545, %v545
      %v562 = vadd.f32 %v558, 0.0
      %v563 = vadd.f32 %v559, 0.0
      %v564 = vadd.f32 %v560, 0.0
      %v565 = vadd.f32 %v561, 0.0
      %v566 = vmul.f32 %v546, %v546
      %v567 = vmul.f32 %v547, %v547
      %v568 = vmul.f32 %v548, %v548
      %v569 = vmul.f32 %v549, %v549
      %v570 = vadd.f32 %v566, 0.0
      %v571 = vadd.f32 %v567, 0.0
      %v572 = vadd.f32 %v568, 0.0
      %v573 = vadd.f32 %v569, 0.0
      %574 = vst [vmem:[#allocation2] sm:$0xff] %v554
      %575 = vst [vmem:[#allocation2 + $0x8] sm:$0xff] %v555
      %576 = vst [vmem:[#allocation2 + $0x10] sm:$0xff] %v556
      %577 = vst [vmem:[#allocation2 + $0x18] sm:$0xff] %v557
      %578 = vst [vmem:[#allocation2 + $0x20] sm:$0xff] %v562
      %579 = vst [vmem:[#allocation2 + $0x28] sm:$0xff] %v563
      %580 = vst [vmem:[#allocation2 + $0x30] sm:$0xff] %v564
      %581 = vst [vmem:[#allocation2 + $0x38] sm:$0xff] %v565
      %582 = vst [vmem:[#allocation2 + $0x40] sm:$0xff] %v570
      %583 = vst [vmem:[#allocation2 + $0x48] sm:$0xff] %v571
      %584 = vst [vmem:[#allocation2 + $0x50] sm:$0xff] %v572
      %585 = vst [vmem:[#allocation2 + $0x58] sm:$0xff] %v573
      %v586 = vld [vmem:[#allocation2] sm:$0xff]
      %v587 = vld [vmem:[#allocation2 + $0x8] sm:$0xff]
      %v588 = vld [vmem:[#allocation2 + $0x10] sm:$0xff]
      %v589 = vld [vmem:[#allocation2 + $0x18] sm:$0xff]
      %v590 = vld [vmem:[#allocation2 + $0x20] sm:$0xff]
      %v591 = vld [vmem:[#allocation2 + $0x28] sm:$0xff]
      %v592 = vld [vmem:[#allocation2 + $0x30] sm:$0xff]
      %v593 = vld [vmem:[#allocation2 + $0x38] sm:$0xff]
      %v594 = vld [vmem:[#allocation2 + $0x40] sm:$0xff]
      %v595 = vld [vmem:[#allocation2 + $0x48] sm:$0xff]
      %v596 = vld [vmem:[#allocation2 + $0x50] sm:$0xff]
      %v597 = vld [vmem:[#allocation2 + $0x58] sm:$0xff]
      %598 = vmatprep.subr.mxu0 %v252
      %599 = vmatpush1.msra.mxu0 %v251
      %600 = vmatprep.subr.mxu0 %v254
      %601 = vmatpush1.msra.mxu0 %v253
      %602 = vmatprep.subr.mxu0 %v256
      %603 = vmatpush1.msra.mxu0 %v255
      %604 = vmatprep.subr.mxu0 %v258
      %605 = vmatpush1.msra.mxu0 %v257
      %606 = vmatprep.subr.mxu0 %v260
      %607 = vmatpush1.msra.mxu0 %v259
      %608 = vmatprep.subr.mxu0 %v262
      %609 = vmatpush1.msra.mxu0 %v261
      %610 = vmatprep.subr.mxu0 %v264
      %611 = vmatpush1.msra.mxu0 %v263
      %612 = vmatprep.subr.mxu0 %v266
      %613 = vmatpush1.msra.mxu0 %v265
      %614 = vmatprep.subr.mxu0 %v268
      %615 = vmatpush1.msra.mxu0 %v267
      %616 = vmatprep.subr.mxu0 %v270
      %617 = vmatpush1.msra.mxu0 %v269
      %618 = vmatprep.subr.mxu0 %v272
      %619 = vmatpush1.msra.mxu0 %v271
      %620 = vmatprep.subr.mxu0 %v274
      %621 = vmatpush1.msra.mxu0 %v273
      %622 = vmatprep.subr.mxu0 %v276
      %623 = vmatpush1.msra.mxu0 %v275
      %624 = vmatprep.subr.mxu0 %v278
      %625 = vmatpush1.msra.mxu0 %v277
      %626 = vmatprep.subr.mxu0 %v280
      %627 = vmatpush1.msra.mxu0 %v279
      %628 = vmatprep.subr.mxu0 %v282
      %629 = vmatpush1.msra.mxu0 %v281
      %630 = vmatprep.subr.mxu0 %v284
      %631 = vmatpush1.msra.mxu0 %v283
      %632 = vmatprep.subr.mxu0 %v286
      %633 = vmatpush1.msra.mxu0 %v285
      %634 = vmatprep.subr.mxu0 %v288
      %635 = vmatpush1.msra.mxu0 %v287
      %636 = vmatprep.subr.mxu0 %v290
      %637 = vmatpush1.msra.mxu0 %v289
      %638 = vmatprep.subr.mxu0 %v292
      %639 = vmatpush1.msra.mxu0 %v291
      %640 = vmatprep.subr.mxu0 %v294
      %641 = vmatpush1.msra.mxu0 %v293
      %642 = vmatprep.subr.mxu0 %v296
      %643 = vmatpush1.msra.mxu0 %v295
      %644 = vmatprep.subr.mxu0 %v298
      %645 = vmatpush1.msra.mxu0 %v297
      %646 = vmatprep.subr.mxu0 %v300
      %647 = vmatpush1.msra.mxu0 %v299
      %648 = vmatprep.subr.mxu0 %v302
      %649 = vmatpush1.msra.mxu0 %v301
      %650 = vmatprep.subr.mxu0 %v304
      %651 = vmatpush1.msra.mxu0 %v303
      %652 = vmatprep.subr.mxu0 %v306
      %653 = vmatpush1.msra.mxu0 %v305
      %654 = vmatprep.subr.mxu0 %v308
      %655 = vmatpush1.msra.mxu0 %v307
      %656 = vmatprep.subr.mxu0 %v310
      %657 = vmatpush1.msra.mxu0 %v309
      %658 = vmatprep.subr.mxu0 %v312
      %659 = vmatpush1.msra.mxu0 %v311
      %660 = vmatprep.subr.mxu0 %v314
      %661 = vmatpush1.msra.mxu0 %v313
      %662 = vmatprep.mubr.f32.mxu0 %v587
      %663 = vmatmul.mubr.f32.gmra.mrb[0].mxu0 %v586
      %v664 = vpop.f32.mrb[0].mxu0
      %v665 = vadd.f32 0.0, %v664
      %v666 = vpop.f32.mrb[0].mxu0
      %v667 = vadd.f32 0.0, %v666
      %668 = vmatprep.mubr.f32.mxu0 %v589
      %669 = vmatmul.mubr.f32.gmra.mrb[0].mxu0 %v588
      %v670 = vpop.f32.mrb[0].mxu0
      %v671 = vadd.f32 0.0, %v670
      %v672 = vpop.f32.mrb[0].mxu0
      %v673 = vadd.f32 0.0, %v672
      %674 = vmatprep.mubr.f32.mxu0 %v591
      %675 = vmatmul.mubr.f32.gmra.mrb[0].mxu0 %v590
      %v676 = vpop.f32.mrb[0].mxu0
      %v677 = vadd.f32 0.0, %v676
      %v678 = vpop.f32.mrb[0].mxu0
      %v679 = vadd.f32 0.0, %v678
      %680 = vmatprep.mubr.f32.mxu0 %v593
      %681 = vmatmul.mubr.f32.gmra.mrb[0].mxu0 %v592
      %v682 = vpop.f32.mrb[0].mxu0
      %v683 = vadd.f32 0.0, %v682
      %v684 = vpop.f32.mrb[0].mxu0
      %v685 = vadd.f32 0.0, %v684
      %686 = vmatprep.mubr.f32.mxu0 %v595
      %687 = vmatmul.mubr.f32.gmra.mrb[0].mxu0 %v594
      %v688 = vpop.f32.mrb[0].mxu0
      %v689 = vadd.f32 0.0, %v688
      %v690 = vpop.f32.mrb[0].mxu0
      %v691 = vadd.f32 0.0, %v690
      %692 = vmatprep.mubr.f32.mxu0 %v597
      %693 = vmatmul.mubr.f32.gmra.mrb[0].mxu0 %v596
      %v694 = vpop.f32.mrb[0].mxu0
      %v695 = vadd.f32 0.0, %v694
      %v696 = vpop.f32.mrb[0].mxu0
      %v697 = vadd.f32 0.0, %v696
      %698 = vdwg.mxu0
      %v699 = vld [vmem:[%s4] sm:$0xff]
      %v700 = vld [vmem:[%s4 + $0x8] sm:$0xff]
      %v701 = vld [vmem:[%s4 + $0x10] sm:$0xff]
      %v702 = vld [vmem:[%s4 + $0x18] sm:$0xff]
      %v703 = vld [vmem:[%s4 + $0x20] sm:$0xff]
      %v704 = vld [vmem:[%s4 + $0x28] sm:$0xff]
      %vm705 = vcmask 392192
      %v707 = vsel %vm705, %v699, 0
      %v710 = vsel %vm705, %v700, 0
      %v713 = vsel %vm705, %v701, 0
      %v716 = vsel %vm705, %v702, 0
      %v719 = vsel %vm705, %v703, 0
      %v722 = vsel %vm705, %v704, 0
      %724 = vmatprep.subr.mxu0 %v667
      %725 = vmatpush1.msra.mxu0 %v665
      %726 = vmatprep.subr.mxu0 %v673
      %727 = vmatpush1.msra.mxu0 %v671
      %728 = vmatprep.subr.mxu0 %v679
      %729 = vmatpush1.msra.mxu0 %v677
      %730 = vmatprep.subr.mxu0 %v685
      %731 = vmatpush1.msra.mxu0 %v683
      %732 = vmatprep.subr.mxu0 %v691
      %733 = vmatpush1.msra.mxu0 %v689
      %734 = vmatprep.subr.mxu0 %v697
      %735 = vmatpush1.msra.mxu0 %v695
      %736 = vmatprep.subr.mxu0 0.0
      %737 = vmatpush1.msra.mxu0 0.0
      %738 = vmatprep.subr.mxu0 0.0
      %739 = vmatpush1.msra.mxu0 0.0
      %740 = vmatprep.subr.mxu0 0.0
      %741 = vmatpush1.msra.mxu0 0.0
      %742 = vmatprep.subr.mxu0 0.0
      %743 = vmatpush1.msra.mxu0 0.0
      %744 = vmatprep.subr.mxu0 0.0
      %745 = vmatpush1.msra.mxu0 0.0
      %746 = vmatprep.subr.mxu0 0.0
      %747 = vmatpush1.msra.mxu0 0.0
      %748 = vmatprep.subr.mxu0 0.0
      %749 = vmatpush1.msra.mxu0 0.0
      %750 = vmatprep.subr.mxu0 0.0
      %751 = vmatpush1.msra.mxu0 0.0
      %752 = vmatprep.subr.mxu0 0.0
      %753 = vmatpush1.msra.mxu0 0.0
      %754 = vmatprep.subr.mxu0 0.0
      %755 = vmatpush1.msra.mxu0 0.0
      %756 = vmatprep.subr.mxu0 0.0
      %757 = vmatpush1.msra.mxu0 0.0
      %758 = vmatprep.subr.mxu0 0.0
      %759 = vmatpush1.msra.mxu0 0.0
      %760 = vmatprep.subr.mxu0 0.0
      %761 = vmatpush1.msra.mxu0 0.0
      %762 = vmatprep.subr.mxu0 0.0
      %763 = vmatpush1.msra.mxu0 0.0
      %764 = vmatprep.subr.mxu0 0.0
      %765 = vmatpush1.msra.mxu0 0.0
      %766 = vmatprep.subr.mxu0 0.0
      %767 = vmatpush1.msra.mxu0 0.0
      %768 = vmatprep.subr.mxu0 0.0
      %769 = vmatpush1.msra.mxu0 0.0
      %770 = vmatprep.subr.mxu0 0.0
      %771 = vmatpush1.msra.mxu0 0.0
      %772 = vmatprep.subr.mxu0 0.0
      %773 = vmatpush1.msra.mxu0 0.0
      %774 = vmatprep.subr.mxu0 0.0
      %775 = vmatpush1.msra.mxu0 0.0
      %776 = vmatprep.subr.mxu0 0.0
      %777 = vmatpush1.msra.mxu0 0.0
      %778 = vmatprep.subr.mxu0 0.0
      %779 = vmatpush1.msra.mxu0 0.0
      %780 = vmatprep.subr.mxu0 0.0
      %781 = vmatpush1.msra.mxu0 0.0
      %782 = vmatprep.subr.mxu0 0.0
      %783 = vmatpush1.msra.mxu0 0.0
      %784 = vmatprep.subr.mxu0 0.0
      %785 = vmatpush1.msra.mxu0 0.0
      %786 = vmatprep.subr.mxu0 0.0
      %787 = vmatpush1.msra.mxu0 0.0
      %788 = vmatprep.mubr.f32.mxu0 0.0
      %789 = vmatmul.mubr.f32.gmra.mrb[0].mxu0 %v707
      %v790 = vpop.f32.mrb[0].mxu0
      %v791 = vadd.f32 0.0, %v790
      %v792 = vpop.f32.mrb[0].mxu0
      %v793 = vadd.f32 0.0, %v792
      %794 = vmatprep.mubr.f32.mxu0 0.0
      %795 = vmatmul.mubr.f32.gmra.mrb[0].mxu0 %v710
      %v796 = vpop.f32.mrb[0].mxu0
      %v797 = vadd.f32 0.0, %v796
      %v798 = vpop.f32.mrb[0].mxu0
      %v799 = vadd.f32 0.0, %v798
      %800 = vmatprep.mubr.f32.mxu0 0.0
      %801 = vmatmul.mubr.f32.gmra.mrb[0].mxu0 %v713
      %v802 = vpop.f32.mrb[0].mxu0
      %v803 = vadd.f32 0.0, %v802
      %v804 = vpop.f32.mrb[0].mxu0
      %v805 = vadd.f32 0.0, %v804
      %806 = vmatprep.mubr.f32.mxu0 0.0
      %807 = vmatmul.mubr.f32.gmra.mrb[0].mxu0 %v716
      %v808 = vpop.f32.mrb[0].mxu0
      %v809 = vadd.f32 0.0, %v808
      %v810 = vpop.f32.mrb[0].mxu0
      %v811 = vadd.f32 0.0, %v810
      %812 = vmatprep.mubr.f32.mxu0 0.0
      %813 = vmatmul.mubr.f32.gmra.mrb[0].mxu0 %v719
      %v814 = vpop.f32.mrb[0].mxu0
      %v815 = vadd.f32 0.0, %v814
      %v816 = vpop.f32.mrb[0].mxu0
      %v817 = vadd.f32 0.0, %v816
      %818 = vmatprep.mubr.f32.mxu0 0.0
      %819 = vmatmul.mubr.f32.gmra.mrb[0].mxu0 %v722
      %v820 = vpop.f32.mrb[0].mxu0
      %v821 = vadd.f32 0.0, %v820
      %v822 = vpop.f32.mrb[0].mxu0
      %v823 = vadd.f32 0.0, %v822
      %824 = vdwg.mxu0
      %v825 = vmul.f32 %v791, %v791
      %v826 = vmul.f32 %v793, %v793
      %v827 = vmul.f32 %v797, %v797
      %v828 = vmul.f32 %v799, %v799
      %v829 = vadd.f32 %v825, 1e-06
      %v830 = vadd.f32 %v826, 1e-06
      %v831 = vadd.f32 %v827, 1e-06
      %v832 = vadd.f32 %v828, 1e-06
      %v833 = vmul.f32 %v803, %v815
      %v834 = vmul.f32 %v805, %v817
      %v835 = vmul.f32 %v809, %v821
      %v836 = vmul.f32 %v811, %v823
      %v837 = vadd.f32 %v833, 1e-06
      %v838 = vadd.f32 %v834, 1e-06
      %v839 = vadd.f32 %v835, 1e-06
      %v840 = vadd.f32 %v836, 1e-06
      %v841 = vrcp.pop %v837
      %v842 = vmul.f32 %v829, %v841
      %v843 = vrcp.pop %v838
      %v844 = vmul.f32 %v830, %v843
      %v845 = vrcp.pop %v839
      %v846 = vmul.f32 %v831, %v845
      %v847 = vrcp.pop %v840
      %v848 = vmul.f32 %v832, %v847
      %v849 = vmax.f32 %v842, 0.0
      %v850 = vmax.f32 %v844, 0.0
      %v851 = vmax.f32 %v846, 0.0
      %v852 = vmax.f32 %v848, 0.0
      %v853 = vmin.f32 %v849, 1.0
      %v854 = vmin.f32 %v850, 1.0
      %v855 = vmin.f32 %v851, 1.0
      %v856 = vmin.f32 %v852, 1.0
      %v857 = vadd.f32 %v853, %v855
      %v858 = vrot.slane %v857, 4
      %v859 = vadd.f32 %v857, %v858
      %v860 = vrot.slane %v859, 2
      %v861 = vadd.f32 %v859, %v860
      %v862 = vrot.slane %v861, 1
      %v863 = vadd.f32 %v861, %v862
      %v864 = vadd.f32 %v854, %v856
      %v865 = vrot.slane %v864, 4
      %v866 = vadd.f32 %v864, %v865
      %v867 = vrot.slane %v866, 2
      %v868 = vadd.f32 %v866, %v867
      %v869 = vrot.slane %v868, 1
      %v870 = vadd.f32 %v868, %v869
      %v873 = vcombine.low %v863, %v870
      %v875 = vunpack.c.l.s4 1966171168
      %v876 = vunpack.c.0.s8 %v875
      %v877 = vlaneseq
      %v878 = vshrl.u32 %v877, 7
      %v879 = vsub.s32 %v876, %v878
      %v880 = vrot.slane %v873, %v879
      %v882 = vunpack.c.l.s4 1966171168
      %v883 = vunpack.c.0.s8 %v882
      %v884 = vlaneseq
      %v885 = vshrl.u32 %v884, 7
      %v886 = vsub.s32 %v883, %v885
      %v887 = vrot.slane %v880, %v886
      %v889 = vlaneseq
      %vm890 = vcmp.ge.s32.totalorder %v889, 0
      %vm891 = vcmp.lt.s32.totalorder %v889, 256
      %vm892 = vmand %vm890, %vm891
      %893 = vst.msk [vmem:[%s242] sm:$0x3] %vm892, %v887
      %p894 = scmp.lt.s32.totalorder %s16, 1
      %s895 = scalar_select %p894, %s16, 1
      %s896 = smul.addr %s895, 2
      %s897 = scalar_lea.vmem %s5, %s896
      // Predicated region
      $region41: #{lncc_loss.1} parent=39 // pred_check
        %p898 = pneg %p149
      $region42: #{lncc_loss.1} parent=39 // pred_check_branch
        %900 = sbr.rel (%p898) target = $region44
      $region43: #{lncc_loss.1} parent=39 // pred_region
        _
      $region44: #{lncc_loss.1} parent=39 // pred_fallthru
        _
    $region40: #{lncc_loss.1} parent=5 // pred_fallthru
      _
    %p901 = scmp.le.s32.totalorder 2, %s11
    // Predicated region
    $region45: #{lncc_loss.1} parent=5 // pred_check
      %p902 = pneg %p901
    $region46: #{lncc_loss.1} parent=5 // pred_check_branch
      %904 = sbr.rel (%p902) target = $region48
    $region47: #{lncc_loss.1} parent=5 // pred_region
      %s905 = ssub.s32 %s11, 2
      // Predicated region
      $region49: #{lncc_loss.1} parent=47 // pred_check
        %p906 = pneg %p155
      $region50: #{lncc_loss.1} parent=47 // pred_check_branch
        %908 = sbr.rel (%p906) target = $region52
      $region51: #{lncc_loss.1} parent=47 // pred_region
        %p909 = scmp.lt.s32.totalorder %s17, 1
        %s910 = scalar_select %p909, %s17, 1
        %s911 = smul.addr %s910, 2
        %s912 = scalar_lea.vmem %s5, %s911
      $region52: #{lncc_loss.1} parent=47 // pred_fallthru
        _
    $region48: #{lncc_loss.1} parent=5 // pred_fallthru
      _
  $region6: #{lncc_loss.1} parent=0 // loop_footer
    %s15 = sadd.s32 1, %s11
  $region7: #{lncc_loss.1} parent=0 // loop_footer_branch
    %10 = sbr.rel target = $region3
  $region8: #{lncc_loss.1} parent=0 // loop_exit
    _

</llo_original>
